<compile_context>
chip_gen: v5e
topology: v5e:2x2
jax: 0.10.0
libtpu: 0.0.40
codegen_flags: <defaults>
</compile_context>

<pallas_src>
import jax
import jax.numpy as jnp
from jax.experimental import pallas as pl
from jax.experimental.pallas import tpu as pltpu


# --------------------------------------------------------------------------
# Packing / tiling helpers
# --------------------------------------------------------------------------
def _pad_to(n, m):
    return (n + m - 1) // m * m


def _pack_rows(mats, dtype, row_align):
    """Pack 2-D matrices into one (sum_rows_aligned, max_cols) slab.

    Each matrix is placed at a statically known, row-aligned offset and
    zero-padded; returns (slab, offsets, shapes)."""
    max_c = max(int(m.shape[1]) for m in mats)
    offs, shapes, blocks, off = [], [], [], 0
    for m in mats:
        r, c = int(m.shape[0]), int(m.shape[1])
        offs.append(off)
        shapes.append((r, c))
        rp = (-r) % row_align
        blocks.append(jnp.pad(m.astype(dtype), ((0, rp), (0, max_c - c))))
        off += r + rp
    return jnp.concatenate(blocks, axis=0), tuple(offs), tuple(shapes)


def _choose_spatial_tile(n_batch, hw_pad, tile_s_max):
    """Largest lane-dense tile (multiple of 128 dividing hw_pad) <= tile_s_max,
    preferring >= 2 total grid steps so both v7x TensorCores get work."""
    m = hw_pad // 128
    need_spatial = 1 if n_batch >= 2 else 2
    best = None
    for d in range(1, m + 1):
        if m % d:
            continue
        ts = 128 * d
        if ts <= tile_s_max and (m // d) >= need_spatial:
            best = ts if best is None else max(best, ts)
    if best is None:   # e.g. hw_pad == 128 with a single image: one tiny tile
        best = 128
    return best


def _choose_batch_block(n_batch, tile_s, spatial_steps, tile_s_max, max_nb=8):
    """Images per grid step: amortize tiny spatial extents while keeping
    >= 2 total grid steps whenever the problem allows it."""
    min_steps = min(2, n_batch * spatial_steps)
    best = 1
    for nb in range(1, min(n_batch, max_nb) + 1):
        if n_batch % nb:
            continue
        if nb * tile_s <= tile_s_max and (n_batch // nb) * spatial_steps >= min_steps:
            best = nb
    return best


# --------------------------------------------------------------------------
# Kernel
# --------------------------------------------------------------------------
def _make_kernel(nb, n1, n2, w_offs, w_shapes, b_offs, b_shapes, mm_dtype):
    """Kernel closure over static layer counts and slab offsets.

    Refs (channels on sublanes, spatial on lanes):
      x_ref:   (nb, Cin, TS)   f32
      w_ref:   (rows_w, Cmax)  mm_dtype, packed transposed weights (Co, Ci)
      b_ref:   (rows_b, 1)     f32, packed biases
      out_ref: (nb, Cout, TS)
    """

    def kernel(x_ref, w_ref, b_ref, out_ref):
        def weight(i):
            o = w_offs[i]
            r, c = w_shapes[i]
            return w_ref[o:o + r, 0:c]          # (Co, Ci), static slice (view)

        def bias(i):
            o = b_offs[i]
            r, _ = b_shapes[i]
            return b_ref[o:o + r, :]            # (Co, 1), static slice

        for b in range(nb):                     # static unroll over batch block
            # ---- stage 1: every layer (including its last) uses ReLU ----
            h = x_ref[b].astype(mm_dtype)       # (Cin, TS)
            li = 0
            for wi in range(n1):
                z = jnp.dot(weight(wi), h,
                            preferred_element_type=jnp.float32) + bias(li)
                h = jnp.maximum(z, 0.0).astype(mm_dtype)
                li += 1

            # ---- stage 2, layer 0: split-weight sum replaces cat([h, x]) ----
            # Re-read x here (short live range instead of pinning it across
            # all of stage 1).
            x_res = x_ref[b].astype(mm_dtype)
            z = (jnp.dot(weight(n1), h, preferred_element_type=jnp.float32)
                 + jnp.dot(weight(n1 + 1), x_res,
                           preferred_element_type=jnp.float32)
                 + bias(li))
            li += 1
            if n2 > 1:
                h = jnp.maximum(z, 0.0).astype(mm_dtype)

            # ---- stage 2, remaining layers: ReLU on hidden, none on last ----
            for i in range(1, n2):
                z = jnp.dot(weight(n1 + 1 + i), h,
                            preferred_element_type=jnp.float32) + bias(li)
                li += 1
                if i < n2 - 1:
                    h = jnp.maximum(z, 0.0).astype(mm_dtype)

            out_ref[b] = z.astype(out_ref.dtype)   # final layer: no activation

    return kernel


# --------------------------------------------------------------------------
# Wrapper
# --------------------------------------------------------------------------
def conv_mlp_residual_pallas(x_nchw, stage1_params, stage2_params, *,
                             tile_s_max=8192, matmul_dtype=jnp.bfloat16,
                             vmem_limit_bytes=None):
    """x_nchw: (N, C, H, W).  stageK_params: list of (W (Cin, Cout), b (Cout,)).

    tile_s_max is the primary sweep knob (4096-16384 reasonable; default 8192
    stays well inside every generation's scoped-VMEM default).  Set
    vmem_limit_bytes explicitly if sweeping larger tiles on v7x.
    """
    N, C, H, W = x_nchw.shape
    HW = H * W
    HW_pad = _pad_to(HW, 128)
    tile_s_max = max(128, int(tile_s_max))

    # Free, contiguous reshape (no transpose): channels stay on sublanes,
    # spatial goes to the 128-lane axis.  Pad spatial to a lane-dense extent.
    x3d = x_nchw.reshape(N, C, HW)
    if HW_pad != HW:
        x3d = jnp.pad(x3d, ((0, 0), (0, 0), (0, HW_pad - HW)))

    n1 = len(stage1_params)
    n2 = len(stage2_params)
    d1_last = stage1_params[-1][0].shape[1]
    out_dim = stage2_params[-1][0].shape[1]

    # Transposed weights (Co, Ci); the first stage-2 weight is split into the
    # part acting on the stage-1 output and the part acting on the residual x.
    wts = [w.T for (w, _) in stage1_params]
    w20 = stage2_params[0][0]
    wts.append(w20[:d1_last, :].T)   # (Co, d1_last)
    wts.append(w20[d1_last:, :].T)   # (Co, Cin)
    wts += [w.T for (w, _) in stage2_params[1:]]
    biases = ([b.reshape(-1, 1) for (_, b) in stage1_params]
              + [b.reshape(-1, 1) for (_, b) in stage2_params])

    # One resident weight slab (mm_dtype) + one resident bias slab (f32).
    w_align = 16 if matmul_dtype == jnp.bfloat16 else 8
    w_slab, w_offs, w_shapes = _pack_rows(wts, matmul_dtype, w_align)
    b_slab, b_offs, b_shapes = _pack_rows(biases, jnp.float32, 8)

    # Tiling: big lane-dense spatial tiles, >=2 grid steps when possible,
    # batch-blocking when spatial work per step is tiny.
    tile_s = _choose_spatial_tile(N, HW_pad, tile_s_max)
    spatial_steps = HW_pad // tile_s
    nb = _choose_batch_block(N, tile_s, spatial_steps, tile_s_max)
    grid = (N // nb, spatial_steps)

    kernel = _make_kernel(nb, n1, n2, w_offs, w_shapes, b_offs, b_shapes,
                          matmul_dtype)

    in_specs = [
        pl.BlockSpec((nb, C, tile_s), lambda n, s: (n, 0, s)),
        pl.BlockSpec(w_slab.shape, lambda n, s: (0, 0)),   # resident weights
        pl.BlockSpec(b_slab.shape, lambda n, s: (0, 0)),   # resident biases
    ]
    out_specs = pl.BlockSpec((nb, out_dim, tile_s), lambda n, s: (n, 0, s))

    # Advisory cost hint (tiny-K per-pixel MLP).
    flops = 2 * N * HW_pad * sum(r * c for (r, c) in w_shapes)
    bytes_accessed = (int(x3d.size) * 4 + N * out_dim * HW_pad * 4
                      + int(w_slab.size) * w_slab.dtype.itemsize
                      + int(b_slab.size) * 4)

    cp_kwargs = dict(dimension_semantics=("parallel", "parallel"))
    if vmem_limit_bytes is not None:
        cp_kwargs["vmem_limit_bytes"] = int(vmem_limit_bytes)

    out3d = pl.pallas_call(
        kernel,
        out_shape=jax.ShapeDtypeStruct((N, out_dim, HW_pad), x_nchw.dtype),
        grid_spec=pltpu.PrefetchScalarGridSpec(
            num_scalar_prefetch=0,
            grid=grid,
            in_specs=in_specs,
            out_specs=out_specs,
        ),
        compiler_params=pltpu.CompilerParams(**cp_kwargs),
        cost_estimate=pl.CostEstimate(
            flops=int(flops), transcendentals=0,
            bytes_accessed=int(bytes_accessed)),
    )(x3d, w_slab, b_slab)

    if HW_pad != HW:
        out3d = out3d[:, :, :HW]
    # (N, out_dim, HW) -> NCHW, free contiguous reshape.
    return out3d.reshape(N, out_dim, H, W)


# --------------------------------------------------------------------------
# Pure-JAX reference (PyTorch forward semantics) + demo
# --------------------------------------------------------------------------
def _reference(x_nchw, stage1_params, stage2_params):
    N, C, H, W = x_nchw.shape
    x2d = jnp.transpose(x_nchw, (0, 2, 3, 1)).reshape(N * H * W, C)
    h = x2d
    for w, b in stage1_params:
        h = jnp.maximum(h @ w + b, 0.0)
    h = jnp.concatenate([h, x2d], axis=1)
    for i, (w, b) in enumerate(stage2_params):
        h = h @ w + b
        if i < len(stage2_params) - 1:
            h = jnp.maximum(h, 0.0)
    out_dim = stage2_params[-1][0].shape[1]
    return jnp.transpose(h.reshape(N, H, W, out_dim), (0, 3, 1, 2))


def _init_layer(key, cin, cout, dtype=jnp.float32):
    kw, kb = jax.random.split(key)
    w = jax.random.normal(kw, (cin, cout), dtype) * (1.0 / jnp.sqrt(cin))
    b = jax.random.normal(kb, (cout,), dtype) * 0.01
    return w, b


if __name__ == "__main__":
    # Module hyper-params (small, consistent with the forward pass)
    input_dim = 4
    dims_stage1 = [32, 16]     # stage1: 4 -> 32 -> 16, all ReLU
    dims_stage2 = [32]         # stage2: (16+4) -> 32 -> output_dim
    output_dim = 8

    N, H, W = 2, 16, 16        # H*W = 256 (lane-dense), grid keeps 2 steps

    key = jax.random.PRNGKey(0)
    keys = jax.random.split(key, 16)
    ki = iter(range(16))

    s1_dims = [input_dim] + dims_stage1
    stage1_params = [
        _init_layer(keys[next(ki)], s1_dims[i], s1_dims[i + 1])
        for i in range(len(s1_dims) - 1)
    ]

    s2_dims = [dims_stage1[-1] + input_dim] + dims_stage2 + [output_dim]
    stage2_params = [
        _init_layer(keys[next(ki)], s2_dims[i], s2_dims[i + 1])
        for i in range(len(s2_dims) - 1)
    ]

    x = jax.random.normal(keys[next(ki)], (N, input_dim, H, W), jnp.float32)

    out = conv_mlp_residual_pallas(x, stage1_params, stage2_params)
    out = jax.block_until_ready(out)

    ref = _reference(x, stage1_params, stage2_params)
    assert out.shape == (N, output_dim, H, W), out.shape
    # bf16 MXU operands with f32 accumulation: K <= 36 and O(1) activations,
    # so the deviation from the f32 reference stays well below this tolerance.
    assert jnp.allclose(out, ref, atol=5e-2, rtol=5e-2), "mismatch vs reference"

    print("KERNEL_OK")
</pallas_src>

<mosaic_0001>
module attributes {stable_mosaic.version = 11 : i64} {
  func.func @kernel(%arg0: i32, %arg1: i32, %arg2: memref<1x4x256xf32, #tpu.memory_space<vmem>>, %arg3: memref<128x32xbf16, #tpu.memory_space<vmem>>, %arg4: memref<88x1xf32, #tpu.memory_space<vmem>>, %arg5: memref<1x8x256xf32, #tpu.memory_space<vmem>>) attributes {dimension_semantics = [#tpu.dimension_semantics<parallel>, #tpu.dimension_semantics<parallel>], iteration_bounds = array<i64: 2, 1>, scalar_prefetch = 0 : i64, scratch_operands = 0 : i64, tpu.core_type = #tpu.core_type<tc>, window_params = [{transform_indices = @transform_0, window_bounds = array<i64: 1, 4, 256>}, {pipeline_mode = #tpu.pipeline_mode<synchronous>, transform_indices = @transform_1, window_bounds = array<i64: 128, 32>}, {pipeline_mode = #tpu.pipeline_mode<synchronous>, transform_indices = @transform_2, window_bounds = array<i64: 88, 1>}, {transform_indices = @transform_3, window_bounds = array<i64: 1, 8, 256>}]} {
    %c0 = arith.constant 0 : index
    %c0_0 = arith.constant 0 : index
    %c0_1 = arith.constant 0 : index
    %0 = vector.load %arg2[%c0, %c0_0, %c0_1] : memref<1x4x256xf32, #tpu.memory_space<vmem>>, vector<1x4x256xf32>
    %1 = vector.shape_cast %0 : vector<1x4x256xf32> to vector<4x256xf32>
    %2 = arith.truncf %1 : vector<4x256xf32> to vector<4x256xbf16>
    %c0_2 = arith.constant 0 : index
    %c0_3 = arith.constant 0 : index
    %3 = vector.load %arg3[%c0_2, %c0_3] : memref<128x32xbf16, #tpu.memory_space<vmem>>, vector<32x4xbf16>
    %cst = arith.constant dense<0.000000e+00> : vector<32x256xf32>
    %4 = tpu.matmul %3, %2, %cst {dimension_numbers = #tpu.dot_dimension_numbers<[1], [0], [0], [1], [0, 0, 1, 1], [], []>} : vector<32x4xbf16>, vector<4x256xbf16>, vector<32x256xf32> -> vector<32x256xf32>
    %c0_4 = arith.constant 0 : index
    %c0_5 = arith.constant 0 : index
    %5 = vector.load %arg4[%c0_4, %c0_5] : memref<88x1xf32, #tpu.memory_space<vmem>>, vector<32x1xf32>
    %6 = vector.broadcast %5 : vector<32x1xf32> to vector<32x256xf32>
    %7 = arith.addf %4, %6 : vector<32x256xf32>
    %cst_6 = arith.constant 0.000000e+00 : f32
    %8 = vector.broadcast %cst_6 : f32 to vector<32x256xf32>
    %9 = arith.maximumf %7, %8 : vector<32x256xf32>
    %10 = arith.truncf %9 : vector<32x256xf32> to vector<32x256xbf16>
    %c32 = arith.constant 32 : index
    %c0_7 = arith.constant 0 : index
    %11 = vector.load %arg3[%c32, %c0_7] : memref<128x32xbf16, #tpu.memory_space<vmem>>, vector<16x32xbf16>
    %cst_8 = arith.constant dense<0.000000e+00> : vector<16x256xf32>
    %12 = tpu.matmul %11, %10, %cst_8 {dimension_numbers = #tpu.dot_dimension_numbers<[1], [0], [0], [1], [0, 0, 1, 1], [], []>} : vector<16x32xbf16>, vector<32x256xbf16>, vector<16x256xf32> -> vector<16x256xf32>
    %c32_9 = arith.constant 32 : index
    %c0_10 = arith.constant 0 : index
    %13 = vector.load %arg4[%c32_9, %c0_10] : memref<88x1xf32, #tpu.memory_space<vmem>>, vector<16x1xf32>
    %14 = vector.broadcast %13 : vector<16x1xf32> to vector<16x256xf32>
    %15 = arith.addf %12, %14 : vector<16x256xf32>
    %cst_11 = arith.constant 0.000000e+00 : f32
    %16 = vector.broadcast %cst_11 : f32 to vector<16x256xf32>
    %17 = arith.maximumf %15, %16 : vector<16x256xf32>
    %18 = arith.truncf %17 : vector<16x256xf32> to vector<16x256xbf16>
    %c0_12 = arith.constant 0 : index
    %c0_13 = arith.constant 0 : index
    %c0_14 = arith.constant 0 : index
    %19 = vector.load %arg2[%c0_12, %c0_13, %c0_14] : memref<1x4x256xf32, #tpu.memory_space<vmem>>, vector<1x4x256xf32>
    %20 = vector.shape_cast %19 : vector<1x4x256xf32> to vector<4x256xf32>
    %21 = arith.truncf %20 : vector<4x256xf32> to vector<4x256xbf16>
    %c48 = arith.constant 48 : index
    %c0_15 = arith.constant 0 : index
    %22 = vector.load %arg3[%c48, %c0_15] : memref<128x32xbf16, #tpu.memory_space<vmem>>, vector<32x16xbf16>
    %cst_16 = arith.constant dense<0.000000e+00> : vector<32x256xf32>
    %23 = tpu.matmul %22, %18, %cst_16 {dimension_numbers = #tpu.dot_dimension_numbers<[1], [0], [0], [1], [0, 0, 1, 1], [], []>} : vector<32x16xbf16>, vector<16x256xbf16>, vector<32x256xf32> -> vector<32x256xf32>
    %c80 = arith.constant 80 : index
    %c0_17 = arith.constant 0 : index
    %24 = vector.load %arg3[%c80, %c0_17] : memref<128x32xbf16, #tpu.memory_space<vmem>>, vector<32x4xbf16>
    %cst_18 = arith.constant dense<0.000000e+00> : vector<32x256xf32>
    %25 = tpu.matmul %24, %21, %cst_18 {dimension_numbers = #tpu.dot_dimension_numbers<[1], [0], [0], [1], [0, 0, 1, 1], [], []>} : vector<32x4xbf16>, vector<4x256xbf16>, vector<32x256xf32> -> vector<32x256xf32>
    %26 = arith.addf %23, %25 : vector<32x256xf32>
    %c48_19 = arith.constant 48 : index
    %c0_20 = arith.constant 0 : index
    %27 = vector.load %arg4[%c48_19, %c0_20] : memref<88x1xf32, #tpu.memory_space<vmem>>, vector<32x1xf32>
    %28 = vector.broadcast %27 : vector<32x1xf32> to vector<32x256xf32>
    %29 = arith.addf %26, %28 : vector<32x256xf32>
    %cst_21 = arith.constant 0.000000e+00 : f32
    %30 = vector.broadcast %cst_21 : f32 to vector<32x256xf32>
    %31 = arith.maximumf %29, %30 : vector<32x256xf32>
    %32 = arith.truncf %31 : vector<32x256xf32> to vector<32x256xbf16>
    %c112 = arith.constant 112 : index
    %c0_22 = arith.constant 0 : index
    %33 = vector.load %arg3[%c112, %c0_22] : memref<128x32xbf16, #tpu.memory_space<vmem>>, vector<8x32xbf16>
    %cst_23 = arith.constant dense<0.000000e+00> : vector<8x256xf32>
    %34 = tpu.matmul %33, %32, %cst_23 {dimension_numbers = #tpu.dot_dimension_numbers<[1], [0], [0], [1], [0, 0, 1, 1], [], []>} : vector<8x32xbf16>, vector<32x256xbf16>, vector<8x256xf32> -> vector<8x256xf32>
    %c80_24 = arith.constant 80 : index
    %c0_25 = arith.constant 0 : index
    %35 = vector.load %arg4[%c80_24, %c0_25] : memref<88x1xf32, #tpu.memory_space<vmem>>, vector<8x1xf32>
    %36 = vector.broadcast %35 : vector<8x1xf32> to vector<8x256xf32>
    %37 = arith.addf %34, %36 : vector<8x256xf32>
    %c0_26 = arith.constant 0 : index
    %c0_27 = arith.constant 0 : index
    %c0_28 = arith.constant 0 : index
    %38 = vector.load %arg5[%c0_26, %c0_27, %c0_28] : memref<1x8x256xf32, #tpu.memory_space<vmem>>, vector<1x8x256xf32>
    %39 = vector.shape_cast %38 : vector<1x8x256xf32> to vector<8x256xf32>
    %40 = vector.shape_cast %37 : vector<8x256xf32> to vector<1x8x256xf32>
    tpu.vector_store %arg5[%c0_26, %c0_27, %c0_28], %40 {strides = array<i32>} : memref<1x8x256xf32, #tpu.memory_space<vmem>>, vector<1x8x256xf32>,
    return
  }
  func.func @transform_0(%arg0: i32, %arg1: i32) -> (i32, i32, i32) {
    %c0_i32 = arith.constant 0 : i32
    %c0_i32_0 = arith.constant 0 : i32
    return %arg0, %c0_i32, %arg1 : i32, i32, i32
  }
  func.func @transform_1(%arg0: i32, %arg1: i32) -> (i32, i32) {
    %c0_i32 = arith.constant 0 : i32
    %c0_i32_0 = arith.constant 0 : i32
    %c0_i32_1 = arith.constant 0 : i32
    return %c0_i32, %c0_i32_0 : i32, i32
  }
  func.func @transform_2(%arg0: i32, %arg1: i32) -> (i32, i32) {
    %c0_i32 = arith.constant 0 : i32
    %c0_i32_0 = arith.constant 0 : i32
    %c0_i32_1 = arith.constant 0 : i32
    return %c0_i32, %c0_i32_0 : i32, i32
  }
  func.func @transform_3(%arg0: i32, %arg1: i32) -> (i32, i32, i32) {
    %c0_i32 = arith.constant 0 : i32
    %c0_i32_0 = arith.constant 0 : i32
    return %arg0, %c0_i32, %arg1 : i32, i32, i32
  }
}

</mosaic_0001>

<llo_original>
// kernel: tpu_custom_call.1
$region0: #{tpu_custom_call.1}
  #allocation0 [shape = 'u32[]', space=smem, size = 0x4, offset = 0x4, fixed_abs, tag = 'smem constant byte address 0x4 - core index']
  #allocation1 [shape = 'u32[72,128]{1,0:T(1,128)}', space=vmem, size = 0x9000, scoped, tag = 'internal scratch']
  %s0 = inlined_call_operand.vmem [shape: f32[2,4,256], index: 0, kind: input, shape index: {}]
  %s1 = inlined_call_operand.vmem [shape: bf16[128,32], index: 1, kind: input, shape index: {}]
  %s2 = inlined_call_operand.vmem [shape: f32[88,1], index: 2, kind: input, shape index: {}]
  %s3 = inlined_call_operand.hbm [shape: f32[2,8,256], index: 3, kind: output, shape index: {}]
  %s4 = sld [smem:[#allocation0]]
  $region45: #{tpu_custom_call.1} parent=0
    _
  %s6 = ssub.s32 1, %s4
  %s7 = scalar_select 0, %s6, %s4
  $region1: #{tpu_custom_call.1} parent=0
    #allocation2 [shape = 'u8[16384]{0}', space=vmem, size = 0x4000, scoped, tag = 'output window, operand 0']
    #allocation3 [shape = 's32[2]{0}', space=sflag, size = 0x8, scoped, tag = 'scoped memory for tpu_custom_call.1']
    %8 = vsyncpa [#allocation3], 0
    %s9 = scalar_lea.sflag [#allocation3], 1
    %10 = vsyncpa %s9, 0
    loop: start=0, step=1, limit=4
    $region2: #{tpu_custom_call.1} parent=1 // loop_pre_header
      _
    $region3: #{tpu_custom_call.1} parent=1 // loop_header
      %s12 = sphi 0, %s16
      %p13 = scmp.ge.s32.totalorder %s12, 4
      %s19 = sphi 0, %s31
      %s20 = sphi 0, %s27
      %s21 = sphi 0, %s19
      %s22 = sphi 0, %s20
      %s23 = sphi 0, %s21
      %s24 = sphi 0, %s22
      %s36 = sphi 0, %s38
      %s39 = sphi 0, %s36
      %s40 = sphi 0, %s39
      %s56 = sphi 0, %s40
      %s60 = sphi 0, %s60
      %s62 = sphi 0, %s60
      %s63 = sphi 0, %s62
      %s77 = sphi 0, %s63
      %s81 = sphi 0, %s81
      %s83 = sphi 0, %s81
      %s84 = sphi 0, %s83
      %s98 = sphi 0, %s84
      %s106 = sphi 0, %s108
      %s109 = sphi 0, %s106
      %s110 = sphi 0, %s109
      %s126 = sphi 0, %s110
    $region4: #{tpu_custom_call.1} parent=1 // loop_header_branch
      %15 = sbr.rel (%p13) target = $region8
    $region5: #{tpu_custom_call.1} parent=1 // loop_body
      %s17 = ssub.s32 %s12, 1
      %s18 = ssub.s32 %s12, 2
      %s25 = sadd.s32 1, %s20
      %p26 = scmp.ge.s32.totalorder %s25, 1
      %s27 = scalar_select %p26, 0, %s25
      %s28 = sadd.s32 1, %s19
      %s29 = scalar_select %p26, %s28, %s19
      %p30 = scmp.ge.s32.totalorder %s29, 2
      %s31 = scalar_select %p30, 0, %s29
      %s32 = ssub.s32 %s19, %s31
      %s33 = ssub.s32 %s20, %s27
      %s34 = sor.u32 %s32, %s33
      %p35 = scmp.eq.s32.totalorder %s34, 0
      %s37 = sadd.s32 %s36, 1
      %s38 = scalar_select %p35, %s36, %s37
      %p41 = pneg %p35
      %p42 = scmp.eq.s32.totalorder %s12, 1
      %p43 = por %p41, %p42
      %p44 = scmp.ne.s32.totalorder %s36, %s39
      %p45 = scmp.eq.s32.totalorder %s12, 0
      %p46 = por %p44, %p45
      %p47 = scmp.ne.s32.totalorder %s36, %s39
      %p48 = scmp.eq.s32.totalorder %s17, 1
      %p49 = por %p47, %p48
      %p50 = scmp.ne.s32.totalorder %s39, %s40
      %p51 = scmp.eq.s32.totalorder %s17, 0
      %p52 = por %p50, %p51
      %p53 = scmp.ne.s32.totalorder %s39, %s40
      %p54 = scmp.eq.s32.totalorder %s18, 1
      %p55 = por %p53, %p54
      %p57 = scmp.ne.s32.totalorder %s40, %s56
      %p58 = scmp.eq.s32.totalorder %s18, 0
      %p59 = por %p57, %p58
      %s61 = sadd.s32 %s60, 1
      %p64 = scmp.eq.s32.totalorder %s12, 1
      %p65 = scmp.ne.s32.totalorder %s60, %s62
      %p66 = scmp.eq.s32.totalorder %s12, 0
      %p67 = por %p65, %p66
      %p68 = scmp.ne.s32.totalorder %s60, %s62
      %p69 = scmp.eq.s32.totalorder %s17, 1
      %p70 = por %p68, %p69
      %p71 = scmp.ne.s32.totalorder %s62, %s63
      %p72 = scmp.eq.s32.totalorder %s17, 0
      %p73 = por %p71, %p72
      %p74 = scmp.ne.s32.totalorder %s62, %s63
      %p75 = scmp.eq.s32.totalorder %s18, 1
      %p76 = por %p74, %p75
      %p78 = scmp.ne.s32.totalorder %s63, %s77
      %p79 = scmp.eq.s32.totalorder %s18, 0
      %p80 = por %p78, %p79
      %s82 = sadd.s32 %s81, 1
      %p85 = scmp.eq.s32.totalorder %s12, 1
      %p86 = scmp.ne.s32.totalorder %s81, %s83
      %p87 = scmp.eq.s32.totalorder %s12, 0
      %p88 = por %p86, %p87
      %p89 = scmp.ne.s32.totalorder %s81, %s83
      %p90 = scmp.eq.s32.totalorder %s17, 1
      %p91 = por %p89, %p90
      %p92 = scmp.ne.s32.totalorder %s83, %s84
      %p93 = scmp.eq.s32.totalorder %s17, 0
      %p94 = por %p92, %p93
      %p95 = scmp.ne.s32.totalorder %s83, %s84
      %p96 = scmp.eq.s32.totalorder %s18, 1
      %p97 = por %p95, %p96
      %p99 = scmp.ne.s32.totalorder %s84, %s98
      %p100 = scmp.eq.s32.totalorder %s18, 0
      %p101 = por %p99, %p100
      %s102 = ssub.s32 %s19, %s31
      %s103 = ssub.s32 %s20, %s27
      %s104 = sor.u32 %s102, %s103
      %p105 = scmp.eq.s32.totalorder %s104, 0
      %s107 = sadd.s32 %s106, 1
      %s108 = scalar_select %p105, %s106, %s107
      %p111 = pneg %p105
      %p112 = scmp.eq.s32.totalorder %s12, 1
      %p113 = por %p111, %p112
      %p114 = scmp.ne.s32.totalorder %s106, %s109
      %p115 = scmp.eq.s32.totalorder %s12, 0
      %p116 = por %p114, %p115
      %p117 = scmp.ne.s32.totalorder %s106, %s109
      %p118 = scmp.eq.s32.totalorder %s17, 1
      %p119 = por %p117, %p118
      %p120 = scmp.ne.s32.totalorder %s109, %s110
      %p121 = scmp.eq.s32.totalorder %s17, 0
      %p122 = por %p120, %p121
      %p123 = scmp.ne.s32.totalorder %s109, %s110
      %p124 = scmp.eq.s32.totalorder %s18, 1
      %p125 = por %p123, %p124
      %p127 = scmp.ne.s32.totalorder %s110, %s126
      %p128 = scmp.eq.s32.totalorder %s18, 0
      %p129 = por %p127, %p128
      %p130 = scmp.le.s32.totalorder 1, %s12
      %p131 = scmp.lt.s32.totalorder %s12, 3
      %p132 = pnand %p130, %p131
      %p133 = pneg %p132
      // Predicated region
      $region9: #{tpu_custom_call.1} parent=5 // pred_check
        _
      $region10: #{tpu_custom_call.1} parent=5 // pred_check_branch
        %135 = sbr.rel (%p132) target = $region12
      $region11: #{tpu_custom_call.1} parent=5 // pred_region
        %s136 = ssub.s32 %s12, 1
        // Predicated region
        $region13: #{tpu_custom_call.1} parent=11 // pred_check
          %p137 = pneg %p73
        $region14: #{tpu_custom_call.1} parent=11 // pred_check_branch
          %139 = sbr.rel (%p137) target = $region16
        $region15: #{tpu_custom_call.1} parent=11 // pred_region
          _
        $region16: #{tpu_custom_call.1} parent=11 // pred_fallthru
          _
        // Predicated region
        $region17: #{tpu_custom_call.1} parent=11 // pred_check
          %p140 = pneg %p94
        $region18: #{tpu_custom_call.1} parent=11 // pred_check_branch
          %142 = sbr.rel (%p140) target = $region20
        $region19: #{tpu_custom_call.1} parent=11 // pred_region
          _
        $region20: #{tpu_custom_call.1} parent=11 // pred_fallthru
          _
      $region12: #{tpu_custom_call.1} parent=5 // pred_fallthru
        _
      %p143 = scmp.lt.s32.totalorder %s12, 2
      // Predicated region
      $region21: #{tpu_custom_call.1} parent=5 // pred_check
        %p144 = pneg %p143
      $region22: #{tpu_custom_call.1} parent=5 // pred_check_branch
        %146 = sbr.rel (%p144) target = $region24
      $region23: #{tpu_custom_call.1} parent=5 // pred_region
        // Predicated region
        $region25: #{tpu_custom_call.1} parent=23 // pred_check
          %p147 = pneg %p46
        $region26: #{tpu_custom_call.1} parent=23 // pred_check_branch
          %149 = sbr.rel (%p147) target = $region28
        $region27: #{tpu_custom_call.1} parent=23 // pred_region
          %s150 = smul.u32 2, %s20
          %p151 = scmp.lt.s32.totalorder %s19, 1
          %s152 = scalar_select %p151, %s19, 1
          %p153 = scmp.lt.s32.totalorder %s150, 1
          %s154 = scalar_select %p153, %s150, 1
          %s155 = smul.addr %s152, 2
          %s156 = sadd.s32 %s154, %s155
          %s157 = smul.addr %s156, 4
          %s158 = scalar_lea.vmem %s0, %s157
          %s159 = smul.u32 2, %s20
        $region28: #{tpu_custom_call.1} parent=23 // pred_fallthru
          _
      $region24: #{tpu_custom_call.1} parent=5 // pred_fallthru
        _
      %p160 = scmp.le.s32.totalorder 1, %s12
      %p161 = scmp.lt.s32.totalorder %s12, 3
      %p162 = pnand %p160, %p161
      %p163 = pneg %p162
      // Predicated region
      $region29: #{tpu_custom_call.1} parent=5 // pred_check
        _
      $region30: #{tpu_custom_call.1} parent=5 // pred_check_branch
        %165 = sbr.rel (%p162) target = $region32
      $region31: #{tpu_custom_call.1} parent=5 // pred_region
        %s166 = ssub.s32 %s12, 1
        %s167 = smul.u32 2, %s22
        %p168 = scmp.lt.s32.totalorder %s21, 1
        %s169 = scalar_select %p168, %s21, 1
        %p170 = scmp.lt.s32.totalorder %s167, 1
        %s171 = scalar_select %p170, %s167, 1
        %s172 = smul.addr %s169, 2
        %s173 = sadd.s32 %s171, %s172
        %s174 = smul.addr %s173, 4
        %s175 = scalar_lea.vmem %s0, %s174
        %p176 = pneg %p52
        %p177 = pneg %p49
        %p178 = pneg %p73
        %p179 = pneg %p70
        %p180 = pneg %p94
        %p181 = pneg %p91
        %p182 = pneg %p122
        %p183 = pneg %p119
        %s184 = sand.u32 %s109, 1
        %s185 = scalar_lea.sflag [#allocation3], %s184
        %s186 = sand.u32 %s109, 1
        %s187 = smul.addr %s186, 16
        %s188 = scalar_lea.vmem [#allocation2], %s187
        %s189 = smul.u32 2, %s22
        %p190 = scmp.lt.s32.totalorder %s21, 1
        %s191 = scalar_select %p190, %s21, 1
        %p192 = scmp.lt.s32.totalorder %s189, 1
        %s193 = scalar_select %p192, %s189, 1
        %s194 = smul.addr %s191, 2
        %s195 = sadd.s32 %s193, %s194
        %s196 = smul.addr %s195, 4
        %s197 = scalar_lea.vmem %s0, %s196
        %s198 = smul.u32 2, %s22
        %s199 = smul.u32 2, %s22
        %v201 = vld [vmem:[%s197] sm:$0xff]
        %203 = vst [vmem:[#allocation1] ss:$2 sm:$0xff] %v201
        %v204 = vld.sshfl [vmem:[#allocation1] sm:$0xff pattern:$0x75316420]
        %v205 = vld.sshfl [vmem:[#allocation1 + $0x8] sm:$0xff pattern:$0x75316420]
        %v208 = vpack.c.bf16 %v204, %v204
        %v209 = vpack.c.bf16 %v205, %v205
        %v210 = vld [vmem:[%s1] sm:$0xf]
        %v211 = vld [vmem:[%s1 + $0x4] sm:$0xf]
        %v212 = vld [vmem:[%s1 + $0x8] sm:$0xf]
        %v213 = vld [vmem:[%s1 + $0xc] sm:$0xf]
        %v214 = vld [vmem:[%s2] sm:$0xff]
        %v215 = vld [vmem:[%s2 + $0x8] sm:$0xff]
        %v216 = vld [vmem:[%s2 + $0x10] sm:$0xff]
        %v217 = vld [vmem:[%s2 + $0x18] sm:$0xff]
        %219 = vset.pattern.permute.xlu0 0
        %220 = vperm.xlu0 %219, %v214
        %v221 = vpop.permute.xlu0 %220
        %224 = vset.pattern.permute.xlu0 0
        %225 = vperm.xlu0 %224, %v215
        %v226 = vpop.permute.xlu0 %225
        %229 = vset.pattern.permute.xlu0 0
        %230 = vperm.xlu0 %229, %v216
        %v231 = vpop.permute.xlu0 %230
        %234 = vset.pattern.permute.xlu0 0
        %235 = vperm.xlu0 %234, %v217
        %v236 = vpop.permute.xlu0 %235
        %v242 = vunpack.c.l.b16 %v210
        %v243 = vunpack.c.l.b16 %v211
        %v244 = vunpack.c.l.b16 %v212
        %v245 = vunpack.c.l.b16 %v213
        %v246 = vpack.c.b16 %v243, %v242
        %v247 = vpack.c.b16 %v245, %v244
        %vm248 = vcmask 31744
        %v250 = vsel %vm248, %v246, 0
        %v253 = vsel %vm248, %v247, 0
        %vm255 = vcmask 1041408
        %v257 = vsel %vm255, %v208, 0
        %v260 = vsel %vm255, %v209, 0
        %262 = vmatpush.bf16.msra.mxu0 0
        %263 = vmatpush.bf16.msra.mxu0 0
        %264 = vmatpush.bf16.msra.mxu0 0
        %265 = vmatpush.bf16.msra.mxu0 0
        %266 = vmatpush.bf16.msra.mxu0 0
        %267 = vmatpush.bf16.msra.mxu0 0
        %268 = vmatpush.bf16.msra.mxu0 0
        %269 = vmatpush.bf16.msra.mxu0 %v257
        %270 = vmatmul.bf16.gmra.mxu0 %v250
        %v271 = vpop.f32.mrf.mxu0
        %v272 = vadd.f32 %v221, %v271
        %v273 = vpop.f32.mrf.mxu0
        %v274 = vadd.f32 %v226, %v273
        %275 = vmatmul.bf16.gmra.mxu0 %v253
        %v276 = vpop.f32.mrf.mxu0
        %v277 = vadd.f32 %v231, %v276
        %v278 = vpop.f32.mrf.mxu0
        %v279 = vadd.f32 %v236, %v278
        %280 = vdwg.mxu0
        %281 = vmatpush.bf16.msra.mxu0 0
        %282 = vmatpush.bf16.msra.mxu0 0
        %283 = vmatpush.bf16.msra.mxu0 0
        %284 = vmatpush.bf16.msra.mxu0 0
        %285 = vmatpush.bf16.msra.mxu0 0
        %286 = vmatpush.bf16.msra.mxu0 0
        %287 = vmatpush.bf16.msra.mxu0 0
        %288 = vmatpush.bf16.msra.mxu0 %v260
        %289 = vmatmul.bf16.gmra.mxu0 %v250
        %v290 = vpop.f32.mrf.mxu0
        %v291 = vadd.f32 %v221, %v290
        %v292 = vpop.f32.mrf.mxu0
        %v293 = vadd.f32 %v226, %v292
        %294 = vmatmul.bf16.gmra.mxu0 %v253
        %v295 = vpop.f32.mrf.mxu0
        %v296 = vadd.f32 %v231, %v295
        %v297 = vpop.f32.mrf.mxu0
        %v298 = vadd.f32 %v236, %v297
        %299 = vdwg.mxu0
        %v300 = vmax.f32 %v272, 0.0
        %v301 = vmax.f32 %v291, 0.0
        %v302 = vmax.f32 %v274, 0.0
        %v303 = vmax.f32 %v293, 0.0
        %v304 = vmax.f32 %v277, 0.0
        %v305 = vmax.f32 %v296, 0.0
        %v306 = vmax.f32 %v279, 0.0
        %v307 = vmax.f32 %v298, 0.0
        %v308 = vpack.c.bf16 %v302, %v300
        %v309 = vpack.c.bf16 %v303, %v301
        %v310 = vpack.c.bf16 %v306, %v304
        %v311 = vpack.c.bf16 %v307, %v305
        %v312 = vld [vmem:[%s1 + $0x10] sm:$0xf]
        %v313 = vld [vmem:[%s1 + $0x14] sm:$0xf]
        %v314 = vld [vmem:[%s2 + $0x20] sm:$0xff]
        %v315 = vld [vmem:[%s2 + $0x28] sm:$0xff]
        %317 = vset.pattern.permute.xlu0 0
        %318 = vperm.xlu0 %317, %v314
        %v319 = vpop.permute.xlu0 %318
        %322 = vset.pattern.permute.xlu0 0
        %323 = vperm.xlu0 %322, %v315
        %v324 = vpop.permute.xlu0 %323
        %v328 = vunpack.c.l.b16 %v312
        %v329 = vunpack.c.l.b16 %v313
        %v330 = vpack.c.b16 %v329, %v328
        %vm331 = vcmask 261120
        %v333 = vsel %vm331, %v330, 0
        %335 = vmatpush.bf16.msra.mxu0 0
        %336 = vmatpush.bf16.msra.mxu0 0
        %337 = vmatpush.bf16.msra.mxu0 0
        %338 = vmatpush.bf16.msra.mxu0 0
        %339 = vmatpush.bf16.msra.mxu0 0
        %340 = vmatpush.bf16.msra.mxu0 0
        %341 = vmatpush.bf16.msra.mxu0 %v310
        %342 = vmatpush.bf16.msra.mxu0 %v308
        %343 = vmatmul.bf16.gmra.mxu0 %v333
        %v344 = vpop.f32.mrf.mxu0
        %v345 = vadd.f32 %v319, %v344
        %v346 = vpop.f32.mrf.mxu0
        %v347 = vadd.f32 %v324, %v346
        %348 = vdwg.mxu0
        %349 = vmatpush.bf16.msra.mxu0 0
        %350 = vmatpush.bf16.msra.mxu0 0
        %351 = vmatpush.bf16.msra.mxu0 0
        %352 = vmatpush.bf16.msra.mxu0 0
        %353 = vmatpush.bf16.msra.mxu0 0
        %354 = vmatpush.bf16.msra.mxu0 0
        %355 = vmatpush.bf16.msra.mxu0 %v311
        %356 = vmatpush.bf16.msra.mxu0 %v309
        %357 = vmatmul.bf16.gmra.mxu0 %v333
        %v358 = vpop.f32.mrf.mxu0
        %v359 = vadd.f32 %v319, %v358
        %v360 = vpop.f32.mrf.mxu0
        %v361 = vadd.f32 %v324, %v360
        %362 = vdwg.mxu0
        %v363 = vmax.f32 %v345, 0.0
        %v364 = vmax.f32 %v359, 0.0
        %v365 = vmax.f32 %v347, 0.0
        %v366 = vmax.f32 %v361, 0.0
        %v367 = vpack.c.bf16 %v365, %v363
        %v368 = vpack.c.bf16 %v366, %v364
        %v369 = vld [vmem:[%s1 + $0x18] sm:$0xf]
        %v370 = vld [vmem:[%s1 + $0x1c] sm:$0xf]
        %v371 = vld [vmem:[%s1 + $0x20] sm:$0xf]
        %v372 = vld [vmem:[%s1 + $0x24] sm:$0xf]
        %v373 = vld [vmem:[%s1 + $0x28] sm:$0xf]
        %v374 = vld [vmem:[%s1 + $0x2c] sm:$0xf]
        %v375 = vld [vmem:[%s1 + $0x30] sm:$0xf]
        %v376 = vld [vmem:[%s1 + $0x34] sm:$0xf]
        %v381 = vunpack.c.l.b16 %v373
        %v382 = vunpack.c.l.b16 %v374
        %v383 = vunpack.c.l.b16 %v375
        %v384 = vunpack.c.l.b16 %v376
        %v385 = vpack.c.b16 %v382, %v381
        %v386 = vpack.c.b16 %v384, %v383
        %v388 = vsel %vm248, %v385, 0
        %v391 = vsel %vm248, %v386, 0
        %393 = vmatpush.bf16.msra.mxu0 0
        %394 = vmatpush.bf16.msra.mxu0 0
        %395 = vmatpush.bf16.msra.mxu0 0
        %396 = vmatpush.bf16.msra.mxu0 0
        %397 = vmatpush.bf16.msra.mxu0 0
        %398 = vmatpush.bf16.msra.mxu0 0
        %399 = vmatpush.bf16.msra.mxu0 0
        %400 = vmatpush.bf16.msra.mxu0 %v257
        %401 = vmatmul.bf16.gmra.mxu0 %v388
        %v402 = vpop.f32.mrf.mxu0
        %v403 = vadd.f32 0.0, %v402
        %v404 = vpop.f32.mrf.mxu0
        %v405 = vadd.f32 0.0, %v404
        %406 = vmatmul.bf16.gmra.mxu0 %v391
        %v407 = vpop.f32.mrf.mxu0
        %v408 = vadd.f32 0.0, %v407
        %v409 = vpop.f32.mrf.mxu0
        %v410 = vadd.f32 0.0, %v409
        %411 = vdwg.mxu0
        %412 = vmatpush.bf16.msra.mxu0 0
        %413 = vmatpush.bf16.msra.mxu0 0
        %414 = vmatpush.bf16.msra.mxu0 0
        %415 = vmatpush.bf16.msra.mxu0 0
        %416 = vmatpush.bf16.msra.mxu0 0
        %417 = vmatpush.bf16.msra.mxu0 0
        %418 = vmatpush.bf16.msra.mxu0 0
        %419 = vmatpush.bf16.msra.mxu0 %v260
        %420 = vmatmul.bf16.gmra.mxu0 %v388
        %v421 = vpop.f32.mrf.mxu0
        %v422 = vadd.f32 0.0, %v421
        %v423 = vpop.f32.mrf.mxu0
        %v424 = vadd.f32 0.0, %v423
        %425 = vmatmul.bf16.gmra.mxu0 %v391
        %v426 = vpop.f32.mrf.mxu0
        %v427 = vadd.f32 0.0, %v426
        %v428 = vpop.f32.mrf.mxu0
        %v429 = vadd.f32 0.0, %v428
        %430 = vdwg.mxu0
        %v435 = vunpack.c.l.b16 %v369
        %v436 = vunpack.c.l.b16 %v370
        %v437 = vunpack.c.l.b16 %v371
        %v438 = vunpack.c.l.b16 %v372
        %v439 = vpack.c.b16 %v436, %v435
        %v440 = vpack.c.b16 %v438, %v437
        %vm441 = vcmask 130048
        %v443 = vsel %vm441, %v439, 0
        %v446 = vsel %vm441, %v440, 0
        %448 = vmatpush.bf16.msra.mxu0 0
        %449 = vmatpush.bf16.msra.mxu0 0
        %450 = vmatpush.bf16.msra.mxu0 0
        %451 = vmatpush.bf16.msra.mxu0 0
        %452 = vmatpush.bf16.msra.mxu0 0
        %453 = vmatpush.bf16.msra.mxu0 0
        %454 = vmatpush.bf16.msra.mxu0 0
        %455 = vmatpush.bf16.msra.mxu0 %v367
        %456 = vmatmul.bf16.gmra.mxu0 %v443
        %v457 = vpop.f32.mrf.mxu0
        %v458 = vadd.f32 %v403, %v457
        %v459 = vpop.f32.mrf.mxu0
        %v460 = vadd.f32 %v405, %v459
        %461 = vmatmul.bf16.gmra.mxu0 %v446
        %v462 = vpop.f32.mrf.mxu0
        %v463 = vadd.f32 %v408, %v462
        %v464 = vpop.f32.mrf.mxu0
        %v465 = vadd.f32 %v410, %v464
        %466 = vdwg.mxu0
        %467 = vmatpush.bf16.msra.mxu0 0
        %468 = vmatpush.bf16.msra.mxu0 0
        %469 = vmatpush.bf16.msra.mxu0 0
        %470 = vmatpush.bf16.msra.mxu0 0
        %471 = vmatpush.bf16.msra.mxu0 0
        %472 = vmatpush.bf16.msra.mxu0 0
        %473 = vmatpush.bf16.msra.mxu0 0
        %474 = vmatpush.bf16.msra.mxu0 %v368
        %475 = vmatmul.bf16.gmra.mxu0 %v443
        %v476 = vpop.f32.mrf.mxu0
        %v477 = vadd.f32 %v422, %v476
        %v478 = vpop.f32.mrf.mxu0
        %v479 = vadd.f32 %v424, %v478
        %480 = vmatmul.bf16.gmra.mxu0 %v446
        %v481 = vpop.f32.mrf.mxu0
        %v482 = vadd.f32 %v427, %v481
        %v483 = vpop.f32.mrf.mxu0
        %v484 = vadd.f32 %v429, %v483
        %485 = vdwg.mxu0
        %v486 = vld [vmem:[%s2 + $0x30] sm:$0xff]
        %v487 = vld [vmem:[%s2 + $0x38] sm:$0xff]
        %v488 = vld [vmem:[%s2 + $0x40] sm:$0xff]
        %v489 = vld [vmem:[%s2 + $0x48] sm:$0xff]
        %491 = vset.pattern.permute.xlu0 0
        %492 = vperm.xlu0 %491, %v486
        %v493 = vpop.permute.xlu0 %492
        %496 = vset.pattern.permute.xlu0 0
        %497 = vperm.xlu0 %496, %v487
        %v498 = vpop.permute.xlu0 %497
        %501 = vset.pattern.permute.xlu0 0
        %502 = vperm.xlu0 %501, %v488
        %v503 = vpop.permute.xlu0 %502
        %506 = vset.pattern.permute.xlu0 0
        %507 = vperm.xlu0 %506, %v489
        %v508 = vpop.permute.xlu0 %507
        %v510 = vadd.f32 %v458, %v493
        %v511 = vadd.f32 %v477, %v493
        %v512 = vadd.f32 %v460, %v498
        %v513 = vadd.f32 %v479, %v498
        %v514 = vadd.f32 %v463, %v503
        %v515 = vadd.f32 %v482, %v503
        %v516 = vadd.f32 %v465, %v508
        %v517 = vadd.f32 %v484, %v508
        %v518 = vmax.f32 %v510, 0.0
        %v519 = vmax.f32 %v511, 0.0
        %v520 = vmax.f32 %v512, 0.0
        %v521 = vmax.f32 %v513, 0.0
        %v522 = vmax.f32 %v514, 0.0
        %v523 = vmax.f32 %v515, 0.0
        %v524 = vmax.f32 %v516, 0.0
        %v525 = vmax.f32 %v517, 0.0
        %v526 = vpack.c.bf16 %v520, %v518
        %v527 = vpack.c.bf16 %v521, %v519
        %v528 = vpack.c.bf16 %v524, %v522
        %v529 = vpack.c.bf16 %v525, %v523
        %v530 = vld [vmem:[%s1 + $0x38] sm:$0xf]
        %v531 = vld [vmem:[%s2 + $0x50] sm:$0xff]
        %533 = vset.pattern.permute.xlu0 0
        %534 = vperm.xlu0 %533, %v531
        %v535 = vpop.permute.xlu0 %534
        %v538 = vsel %vm331, %v530, 0
        %540 = vmatpush.bf16.msra.mxu0 0
        %541 = vmatpush.bf16.msra.mxu0 0
        %542 = vmatpush.bf16.msra.mxu0 0
        %543 = vmatpush.bf16.msra.mxu0 0
        %544 = vmatpush.bf16.msra.mxu0 0
        %545 = vmatpush.bf16.msra.mxu0 0
        %546 = vmatpush.bf16.msra.mxu0 %v528
        %547 = vmatpush.bf16.msra.mxu0 %v526
        %548 = vmatmul.bf16.gmra.mxu0 %v538
        %v549 = vpop.f32.mrf.mxu0
        %v550 = vadd.f32 %v535, %v549
        %v551 = vpop.f32.mrf.mxu0
        %552 = vdwg.mxu0
        %553 = vmatpush.bf16.msra.mxu0 0
        %554 = vmatpush.bf16.msra.mxu0 0
        %555 = vmatpush.bf16.msra.mxu0 0
        %556 = vmatpush.bf16.msra.mxu0 0
        %557 = vmatpush.bf16.msra.mxu0 0
        %558 = vmatpush.bf16.msra.mxu0 0
        %559 = vmatpush.bf16.msra.mxu0 %v529
        %560 = vmatpush.bf16.msra.mxu0 %v527
        %561 = vmatmul.bf16.gmra.mxu0 %v538
        %v562 = vpop.f32.mrf.mxu0
        %v563 = vadd.f32 %v535, %v562
        %v564 = vpop.f32.mrf.mxu0
        %565 = vdwg.mxu0
        %566 = vst [vmem:[%s188] sm:$0xff] %v550
        %567 = vst [vmem:[%s188 + $0x8] sm:$0xff] %v563
        %s568 = sand.u32 %s109, 1
        %s569 = scalar_lea.sflag [#allocation3], %s568
        %s570 = sand.u32 %s109, 1
        %s571 = smul.addr %s570, 16
        %s572 = scalar_lea.vmem [#allocation2], %s571
        // Predicated region
        $region33: #{tpu_custom_call.1} parent=31 // pred_check
          %p573 = pneg %p119
        $region34: #{tpu_custom_call.1} parent=31 // pred_check_branch
          %575 = sbr.rel (%p573) target = $region36
        $region35: #{tpu_custom_call.1} parent=31 // pred_region
          %s576 = smul.u32 2, %s22
          %578 = vsyncadd %s569, 0
          %s579 = smul.addr %s21, 2
          %s580 = sadd.s32 %s576, %s579
          %s581 = smul.addr %s580, 8
          %s582 = scalar_lea.hbm %s3, %s581
          %s584 = sshll.u32 %s572, 4
          %s585 = int_to_ptr.vmem [resolvable:$true] %s584
          %s586 = sshll.u32 %s582, 4
          %s587 = int_to_ptr.hbm [resolvable:$true] %s586
          %589 = dma.vmem_to_hbm [thread:$0]  %s585, 256, %s587, %s569
        $region36: #{tpu_custom_call.1} parent=31 // pred_fallthru
          _
      $region32: #{tpu_custom_call.1} parent=5 // pred_fallthru
        _
      %p590 = scmp.le.s32.totalorder 2, %s12
      // Predicated region
      $region37: #{tpu_custom_call.1} parent=5 // pred_check
        %p591 = pneg %p590
      $region38: #{tpu_custom_call.1} parent=5 // pred_check_branch
        %593 = sbr.rel (%p591) target = $region40
      $region39: #{tpu_custom_call.1} parent=5 // pred_region
        %s594 = ssub.s32 %s12, 2
        // Predicated region
        $region41: #{tpu_custom_call.1} parent=39 // pred_check
          %p595 = pneg %p125
        $region42: #{tpu_custom_call.1} parent=39 // pred_check_branch
          %597 = sbr.rel (%p595) target = $region44
        $region43: #{tpu_custom_call.1} parent=39 // pred_region
          %s598 = sand.u32 %s110, 1
          %s599 = scalar_lea.sflag [#allocation3], %s598
          %s600 = sand.u32 %s110, 1
          %s601 = smul.addr %s600, 16
          %s602 = scalar_lea.vmem [#allocation2], %s601
          %604 = dma.done %s599, 256
        $region44: #{tpu_custom_call.1} parent=39 // pred_fallthru
          _
      $region40: #{tpu_custom_call.1} parent=5 // pred_fallthru
        _
    $region6: #{tpu_custom_call.1} parent=1 // loop_footer
      %s16 = sadd.s32 1, %s12
    $region7: #{tpu_custom_call.1} parent=1 // loop_footer_branch
      %11 = sbr.rel target = $region3
    $region8: #{tpu_custom_call.1} parent=1 // loop_exit
      _
    %605 = vsyncpa [#allocation3], 1
    %s606 = scalar_lea.sflag [#allocation3], 1
    %607 = vsyncpa %s606, 1

</llo_original>
